<compile_context>
chip_gen: v7x
topology: tpu7x:2x2x1
jax: 0.10.0
libtpu: 0.0.40
codegen_flags: <defaults>
</compile_context>

<pallas_src>
import functools

import jax
import jax.numpy as jnp
from jax import lax
from jax.experimental import pallas as pl
from jax.experimental.pallas import tpu as pltpu

EPS = 1e-5


# --------------------------------------------------------------------------
# Kernels
# --------------------------------------------------------------------------
def _conv1x1_stats_kernel(x_ref, w_ref, y_ref, stats_ref):
    """y = x @ w (bf16 operands, f32 acc); emit per-tile (sum, sum_sq) of y.

    y is stored in bf16 (halves HBM traffic); stats stay f32.
    Zero-padded tail rows of x produce zero rows of y -> stats stay exact.
    """
    y = jnp.dot(x_ref[...].astype(jnp.bfloat16), w_ref[...],
                preferred_element_type=jnp.float32)            # (tm, P) f32
    y_ref[...] = y.astype(y_ref.dtype)
    s = jnp.sum(y, axis=0, keepdims=True)                      # (1, P)
    ss = jnp.sum(y * y, axis=0, keepdims=True)                 # (1, P)
    stats_ref[...] = jnp.concatenate([s, ss], axis=0).reshape(stats_ref.shape)


def _conv3x3_stats_kernel(y1_ref, scale_ref, shift_ref, w2_ref, y2_ref, stats_ref):
    """BN1 affine + ReLU (f32 VPU), then 3x3 conv (pad=1) as 9 accumulating
    per-tap matmuls (K=P each) into an f32 accumulator.  No im2col patches
    tensor is materialized.  Emits per-block BN2 partial stats."""
    Bt, H, W, P = y1_ref.shape
    Pout = w2_ref.shape[2]

    a = jnp.maximum(y1_ref[...].astype(jnp.float32) * scale_ref[...]
                    + shift_ref[...], 0.0)
    a = a.astype(jnp.bfloat16)                                  # (Bt,H,W,P)

    # Value-level zero padding by 1 pixel (no scratch, no halo bookkeeping).
    zrow = jnp.zeros((Bt, 1, W, P), jnp.bfloat16)
    zcol = jnp.zeros((Bt, H + 2, 1, P), jnp.bfloat16)
    ap = jnp.concatenate([zrow, a, zrow], axis=1)               # (Bt,H+2,W,  P)
    ap = jnp.concatenate([zcol, ap, zcol], axis=2)              # (Bt,H+2,W+2,P)

    acc = jnp.zeros((Bt * H * W, Pout), jnp.float32)
    for k in range(9):                                          # static unroll
        ky, kx = k // 3, k % 3
        tap = ap[:, ky:ky + H, kx:kx + W, :].reshape(Bt * H * W, P)
        acc = acc + jnp.dot(tap, w2_ref[k], preferred_element_type=jnp.float32)

    y2_ref[...] = acc.reshape(Bt, H, W, Pout).astype(y2_ref.dtype)
    s = jnp.sum(acc, axis=0, keepdims=True)
    ss = jnp.sum(acc * acc, axis=0, keepdims=True)
    stats_ref[...] = jnp.concatenate([s, ss], axis=0).reshape(stats_ref.shape)


def _bn_relu_conv1x1_stats_kernel(total_rows, use_mask,
                                  y2_ref, scale_ref, shift_ref, w_ref,
                                  y3_ref, stats_ref):
    """BN2 affine + ReLU, conv3 (1x1) matmul; emit BN3 partial stats.

    When the row dimension was padded (use_mask), zero the tail rows *after*
    the affine (shift would otherwise leak into the stats)."""
    a = jnp.maximum(y2_ref[...].astype(jnp.float32) * scale_ref[...]
                    + shift_ref[...], 0.0)
    if use_mask:
        tm = y2_ref.shape[0]
        row = pl.program_id(0) * tm + lax.broadcasted_iota(jnp.int32, a.shape, 0)
        a = jnp.where(row < total_rows, a, 0.0)
    y3 = jnp.dot(a.astype(jnp.bfloat16), w_ref[...],
                 preferred_element_type=jnp.float32)            # (tm, 4P)
    y3_ref[...] = y3.astype(y3_ref.dtype)
    s = jnp.sum(y3, axis=0, keepdims=True)
    ss = jnp.sum(y3 * y3, axis=0, keepdims=True)
    stats_ref[...] = jnp.concatenate([s, ss], axis=0).reshape(stats_ref.shape)


def _bn_residual_relu_kernel(y3_ref, x_ref, scale_ref, shift_ref, o_ref):
    """BN3 affine + residual add (x tile already resident) + ReLU."""
    y = y3_ref[...].astype(jnp.float32) * scale_ref[...] + shift_ref[...]
    o_ref[...] = jnp.maximum(y + x_ref[...].astype(jnp.float32), 0.0
                             ).astype(o_ref.dtype)


# --------------------------------------------------------------------------
# Wrapper helpers
# --------------------------------------------------------------------------
def _round_up(x, m):
    return ((x + m - 1) // m) * m


def _tpu_budget():
    """Generation-aware (vmem_limit_bytes, default tile_rows)."""
    vmem_cap = 128 * 1024 * 1024
    try:
        info = pltpu.get_tpu_info()
        vmem_cap = int(getattr(info, "vmem_capacity_bytes", vmem_cap))
    except Exception:
        pass
    if vmem_cap >= 100 * 1024 * 1024:
        # v5e / v6e: 128 MiB physical VMEM -> big tiles, generous scoped limit.
        return 64 * 1024 * 1024, 1024
    # v7x: 64 MiB per TensorCore -> cap the scoped limit, smaller row tiles
    # (bf16 intermediates keep tm=512 comfortably within budget).
    return 44 * 1024 * 1024, 512


def _pick_img_block(n_images, hw, row_target):
    """Images per 3x3-pass grid step: batch enough rows for the MXU, but keep
    >= 2 grid steps when possible so both v7x TensorCores get work."""
    best = 1
    for bt in range(1, n_images + 1):
        if n_images % bt != 0:
            continue
        if bt * hw > max(row_target, hw):
            continue
        if n_images // bt >= 2:
            best = bt
    return best


def _fold_bn(partial_stats, count, gamma, beta):
    """Reduce per-tile (sum, sum_sq) partials -> per-channel (scale, shift).

    scale = gamma / sqrt(var + eps), shift = beta - mean * scale, with biased
    variance over (N, H, W), exactly as torch BatchNorm2d training forward.
    TODO(synk): Welford/Chan combine for production-scale M (cancellation).
    """
    s = jnp.sum(partial_stats[:, 0, :], axis=0)
    ss = jnp.sum(partial_stats[:, 1, :], axis=0)
    mean = s / count
    var = jnp.maximum(ss / count - mean * mean, 0.0)
    scale = gamma.reshape(-1) * lax.rsqrt(var + EPS)
    shift = beta.reshape(-1) - mean * scale
    return (scale.reshape(1, -1).astype(jnp.float32),
            shift.reshape(1, -1).astype(jnp.float32))


# --------------------------------------------------------------------------
# Forward
# --------------------------------------------------------------------------
def bottleneck_forward(x_nhwc, params, *, tile_rows=None):
    N, H, W, Cin = x_nhwc.shape
    P = params["w1"].shape[1]          # planes
    Cout = params["w3"].shape[1]       # planes * 4
    assert Cout == Cin, "downsample=None requires inplanes == planes * 4"

    vmem_limit, default_rows = _tpu_budget()
    if tile_rows is None:
        tile_rows = default_rows
    cparams = pltpu.CompilerParams(
        dimension_semantics=("parallel",),
        vmem_limit_bytes=vmem_limit,
    )

    M = N * H * W
    tm = min(_round_up(tile_rows, 8), _round_up(M, 8))
    Mp = _round_up(M, tm)              # padded row count (tail handled below)
    n_tiles = Mp // tm
    pad = Mp - M

    x2d = x_nhwc.reshape(M, Cin)
    x2d_p = jnp.pad(x2d, ((0, pad), (0, 0))) if pad else x2d

    # bf16 MXU operands (f32 accumulation inside the kernels).
    w1 = params["w1"].astype(jnp.bfloat16)                       # (Cin, P)
    w2 = params["w2"].reshape(9, P, P).astype(jnp.bfloat16)      # HWIO->(9,P,P)
    w3 = params["w3"].astype(jnp.bfloat16)                       # (P, 4P)

    # ---- Pass 1: conv1 (1x1) + BN1 partial stats --------------------------
    y1, st1 = pl.pallas_call(
        _conv1x1_stats_kernel,
        grid=(n_tiles,),
        in_specs=[pl.BlockSpec((tm, Cin), lambda i: (i, 0)),
                  pl.BlockSpec((Cin, P), lambda i: (0, 0))],
        out_specs=[pl.BlockSpec((tm, P), lambda i: (i, 0)),
                   pl.BlockSpec((1, 2, P), lambda i: (i, 0, 0))],
        out_shape=[jax.ShapeDtypeStruct((Mp, P), jnp.bfloat16),
                   jax.ShapeDtypeStruct((n_tiles, 2, P), jnp.float32)],
        compiler_params=cparams,
    )(x2d_p, w1)
    scale1, shift1 = _fold_bn(st1, M, params["g1"], params["b1"])

    # ---- Pass 2: BN1+ReLU + conv2 (3x3, pad=1) + BN2 partial stats --------
    Bt = _pick_img_block(N, H * W, tile_rows)
    n_img_blocks = N // Bt
    y1_4d = (y1[:M] if pad else y1).reshape(N, H, W, P)
    y2, st2 = pl.pallas_call(
        _conv3x3_stats_kernel,
        grid=(n_img_blocks,),
        in_specs=[pl.BlockSpec((Bt, H, W, P), lambda n: (n, 0, 0, 0)),
                  pl.BlockSpec((1, P), lambda n: (0, 0)),
                  pl.BlockSpec((1, P), lambda n: (0, 0)),
                  pl.BlockSpec((9, P, P), lambda n: (0, 0, 0))],
        out_specs=[pl.BlockSpec((Bt, H, W, P), lambda n: (n, 0, 0, 0)),
                   pl.BlockSpec((1, 2, P), lambda n: (n, 0, 0))],
        out_shape=[jax.ShapeDtypeStruct((N, H, W, P), jnp.bfloat16),
                   jax.ShapeDtypeStruct((n_img_blocks, 2, P), jnp.float32)],
        compiler_params=cparams,
    )(y1_4d, scale1, shift1, w2)
    scale2, shift2 = _fold_bn(st2, M, params["g2"], params["b2"])

    # ---- Pass 3: BN2+ReLU + conv3 (1x1) + BN3 partial stats ---------------
    y2_2d = y2.reshape(M, P)
    y2_p = jnp.pad(y2_2d, ((0, pad), (0, 0))) if pad else y2_2d
    kern3 = functools.partial(_bn_relu_conv1x1_stats_kernel, M, pad > 0)
    y3, st3 = pl.pallas_call(
        kern3,
        grid=(n_tiles,),
        in_specs=[pl.BlockSpec((tm, P), lambda i: (i, 0)),
                  pl.BlockSpec((1, P), lambda i: (0, 0)),
                  pl.BlockSpec((1, P), lambda i: (0, 0)),
                  pl.BlockSpec((P, Cout), lambda i: (0, 0))],
        out_specs=[pl.BlockSpec((tm, Cout), lambda i: (i, 0)),
                   pl.BlockSpec((1, 2, Cout), lambda i: (i, 0, 0))],
        out_shape=[jax.ShapeDtypeStruct((Mp, Cout), jnp.bfloat16),
                   jax.ShapeDtypeStruct((n_tiles, 2, Cout), jnp.float32)],
        compiler_params=cparams,
    )(y2_p, scale2, shift2, w3)
    scale3, shift3 = _fold_bn(st3, M, params["g3"], params["b3"])

    # ---- Pass 4: BN3 affine + residual add + ReLU --------------------------
    out_p = pl.pallas_call(
        _bn_residual_relu_kernel,
        grid=(n_tiles,),
        in_specs=[pl.BlockSpec((tm, Cout), lambda i: (i, 0)),
                  pl.BlockSpec((tm, Cout), lambda i: (i, 0)),
                  pl.BlockSpec((1, Cout), lambda i: (0, 0)),
                  pl.BlockSpec((1, Cout), lambda i: (0, 0))],
        out_specs=pl.BlockSpec((tm, Cout), lambda i: (i, 0)),
        out_shape=jax.ShapeDtypeStruct((Mp, Cout), x_nhwc.dtype),
        compiler_params=cparams,
    )(y3, x2d_p, scale3, shift3)

    out2d = out_p[:M] if pad else out_p
    return out2d.reshape(N, H, W, Cout)


# --------------------------------------------------------------------------
# Pure-JAX reference (f32 everywhere) for correctness check
# --------------------------------------------------------------------------
def bottleneck_reference(x_nhwc, params):
    def conv1x1(h, w):
        return jnp.einsum("nhwc,cd->nhwd", h, w)

    def bn(h, g, b):
        mean = jnp.mean(h, axis=(0, 1, 2), keepdims=True)
        var = jnp.mean((h - mean) ** 2, axis=(0, 1, 2), keepdims=True)
        return (h - mean) * (g.reshape(1, 1, 1, -1) * lax.rsqrt(var + EPS)) \
            + b.reshape(1, 1, 1, -1)

    h = jax.nn.relu(bn(conv1x1(x_nhwc, params["w1"]), params["g1"], params["b1"]))
    h = lax.conv_general_dilated(
        h, params["w2"], window_strides=(1, 1), padding="SAME",
        dimension_numbers=("NHWC", "HWIO", "NHWC"))
    h = jax.nn.relu(bn(h, params["g2"], params["b2"]))
    h = bn(conv1x1(h, params["w3"]), params["g3"], params["b3"])
    return jax.nn.relu(h + x_nhwc)


if __name__ == "__main__":
    # small shapes: batch=2, spatial=16x16, planes=4 -> inplanes = 4*4 = 16
    N, H, W = 2, 16, 16
    planes = 4
    inplanes = planes * 4  # residual path requires Cin == planes * expansion

    key = jax.random.PRNGKey(0)
    ks = jax.random.split(key, 10)

    params = {
        # conv1: torch weight (P, Cin, 1, 1) -> (Cin, P)
        "w1": 0.1 * jax.random.normal(ks[0], (inplanes, planes), jnp.float32),
        "g1": 1.0 + 0.1 * jax.random.normal(ks[1], (1, planes), jnp.float32),
        "b1": 0.1 * jax.random.normal(ks[2], (1, planes), jnp.float32),
        # conv2: torch weight (P, P, 3, 3) -> HWIO (3, 3, P, P)
        "w2": 0.1 * jax.random.normal(ks[3], (3, 3, planes, planes), jnp.float32),
        "g2": 1.0 + 0.1 * jax.random.normal(ks[4], (1, planes), jnp.float32),
        "b2": 0.1 * jax.random.normal(ks[5], (1, planes), jnp.float32),
        # conv3: torch weight (4P, P, 1, 1) -> (P, 4P)
        "w3": 0.1 * jax.random.normal(ks[6], (planes, planes * 4), jnp.float32),
        "g3": 1.0 + 0.1 * jax.random.normal(ks[7], (1, planes * 4), jnp.float32),
        "b3": 0.1 * jax.random.normal(ks[8], (1, planes * 4), jnp.float32),
    }

    x = jax.random.normal(ks[9], (N, H, W, inplanes), jnp.float32)

    out = bottleneck_forward(x, params)
    jax.block_until_ready(out)

    ref = bottleneck_reference(x, params)
    assert out.shape == ref.shape, (out.shape, ref.shape)
    # bf16 MXU operands + bf16 inter-pass activations (f32 accumulation and
    # f32 BN/ReLU math) through three BN-normalized stages at toy channel
    # widths -> tolerance loosened vs a pure-f32 path.
    assert jnp.allclose(out, ref, atol=5e-2, rtol=5e-2), \
        float(jnp.max(jnp.abs(out - ref)))

    print("KERNEL_OK")
</pallas_src>

<mosaic_0001>
module attributes {stable_mosaic.version = 11 : i64} {
  func.func @_conv1x1_stats_kernel(%arg0: i32, %arg1: memref<512x16xf32, #tpu.memory_space<vmem>>, %arg2: memref<16x4xbf16, #tpu.memory_space<vmem>>, %arg3: memref<512x4xbf16, #tpu.memory_space<vmem>>, %arg4: memref<1x2x4xf32, #tpu.memory_space<vmem>>) attributes {dimension_semantics = [#tpu.dimension_semantics<parallel>], iteration_bounds = array<i64: 1>, scalar_prefetch = 0 : i64, scratch_operands = 0 : i64, tpu.core_type = #tpu.core_type<tc>, window_params = [{transform_indices = @transform_0, window_bounds = array<i64: 512, 16>}, {pipeline_mode = #tpu.pipeline_mode<synchronous>, transform_indices = @transform_1, window_bounds = array<i64: 16, 4>}, {transform_indices = @transform_2, window_bounds = array<i64: 512, 4>}, {transform_indices = @transform_3, window_bounds = array<i64: 1, 2, 4>}]} {
    %c0 = arith.constant 0 : index
    %c0_0 = arith.constant 0 : index
    %0 = vector.load %arg1[%c0, %c0_0] : memref<512x16xf32, #tpu.memory_space<vmem>>, vector<512x16xf32>
    %1 = arith.truncf %0 : vector<512x16xf32> to vector<512x16xbf16>
    %c0_1 = arith.constant 0 : index
    %c0_2 = arith.constant 0 : index
    %2 = vector.load %arg2[%c0_1, %c0_2] : memref<16x4xbf16, #tpu.memory_space<vmem>>, vector<16x4xbf16>
    %cst = arith.constant dense<0.000000e+00> : vector<512x4xf32>
    %3 = tpu.matmul %1, %2, %cst {dimension_numbers = #tpu.dot_dimension_numbers<[1], [0], [0], [1], [0, 0, 1, 1], [], []>} : vector<512x16xbf16>, vector<16x4xbf16>, vector<512x4xf32> -> vector<512x4xf32>
    %4 = arith.truncf %3 : vector<512x4xf32> to vector<512x4xbf16>
    %c0_3 = arith.constant 0 : index
    %c0_4 = arith.constant 0 : index
    %5 = vector.load %arg3[%c0_3, %c0_4] : memref<512x4xbf16, #tpu.memory_space<vmem>>, vector<512x4xbf16>
    tpu.vector_store %arg3[%c0_3, %c0_4], %4 {strides = array<i32>} : memref<512x4xbf16, #tpu.memory_space<vmem>>, vector<512x4xbf16>,
    %cst_5 = arith.constant dense<0.000000e+00> : vector<4xf32>
    %6 = vector.multi_reduction <add>, %3, %cst_5 [0] : vector<512x4xf32> to vector<4xf32>
    %7 = vector.shape_cast %6 : vector<4xf32> to vector<1x4xf32>
    %8 = arith.mulf %3, %3 : vector<512x4xf32>
    %cst_6 = arith.constant dense<0.000000e+00> : vector<4xf32>
    %9 = vector.multi_reduction <add>, %8, %cst_6 [0] : vector<512x4xf32> to vector<4xf32>
    %10 = vector.shape_cast %9 : vector<4xf32> to vector<1x4xf32>
    %11 = tpu.concatenate %7, %10 in 0 : vector<1x4xf32>, vector<1x4xf32> -> vector<2x4xf32>
    %12 = vector.shape_cast %11 : vector<2x4xf32> to vector<1x2x4xf32>
    %c0_7 = arith.constant 0 : index
    %c0_8 = arith.constant 0 : index
    %c0_9 = arith.constant 0 : index
    %13 = vector.load %arg4[%c0_7, %c0_8, %c0_9] : memref<1x2x4xf32, #tpu.memory_space<vmem>>, vector<1x2x4xf32>
    tpu.vector_store %arg4[%c0_7, %c0_8, %c0_9], %12 {strides = array<i32>} : memref<1x2x4xf32, #tpu.memory_space<vmem>>, vector<1x2x4xf32>,
    return
  }
  func.func @transform_0(%arg0: i32) -> (i32, i32) {
    %c0_i32 = arith.constant 0 : i32
    %c0_i32_0 = arith.constant 0 : i32
    return %arg0, %c0_i32 : i32, i32
  }
  func.func @transform_1(%arg0: i32) -> (i32, i32) {
    %c0_i32 = arith.constant 0 : i32
    %c0_i32_0 = arith.constant 0 : i32
    %c0_i32_1 = arith.constant 0 : i32
    return %c0_i32, %c0_i32_0 : i32, i32
  }
  func.func @transform_2(%arg0: i32) -> (i32, i32) {
    %c0_i32 = arith.constant 0 : i32
    %c0_i32_0 = arith.constant 0 : i32
    return %arg0, %c0_i32 : i32, i32
  }
  func.func @transform_3(%arg0: i32) -> (i32, i32, i32) {
    %c0_i32 = arith.constant 0 : i32
    %c0_i32_0 = arith.constant 0 : i32
    %c0_i32_1 = arith.constant 0 : i32
    return %arg0, %c0_i32, %c0_i32_0 : i32, i32, i32
  }
}

</mosaic_0001>

<llo_original>
// kernel: tpu_custom_call.1
$region0: #{tpu_custom_call.1}
  #allocation0 [shape = 'u32[]', space=smem, size = 0x4, offset = 0x4, fixed_abs, tag = 'smem constant byte address 0x4 - core index']
  #allocation1 [shape = 'u32[144,128]{1,0:T(1,128)}', space=vmem, size = 0x12000, scoped, tag = 'internal scratch']
  %s0 = inlined_call_operand.hbm [shape: f32[512,16], index: 0, kind: input, shape index: {}]
  %s1 = inlined_call_operand.hbm [shape: bf16[16,4], index: 1, kind: input, shape index: {}]
  %s2 = inlined_call_operand.hbm [shape: bf16[512,4], index: 2, kind: output, shape index: {0}]
  %s3 = inlined_call_operand.hbm [shape: f32[1,2,4], index: 3, kind: output, shape index: {1}]
  %4 = xla_tuple %s2, %s3
  %s5 = sld [smem:[#allocation0]]
  $region34: #{tpu_custom_call.1} parent=0
    _
  %s7 = ssub.s32 1, %s5
  %s8 = scalar_select 0, %s7, %s5
  $region1: #{tpu_custom_call.1} parent=0
    #allocation2 [shape = 'u8[262144]{0}', space=vmem, size = 0x40000, scoped, tag = 'input window, operand 0, single buffered']
    #allocation3 [shape = 's32[1]{0}', space=sflag, size = 0x4, scoped, tag = 'scoped memory for tpu_custom_call.1']
    #allocation4 [shape = 's32[1]{0}', space=sflag, size = 0x4, scoped, tag = 'scoped memory for tpu_custom_call.1']
    #allocation5 [shape = 'u8[4096]{0}', space=vmem, size = 0x1000, scoped, tag = 'input window, operand 1, single buffered']
    #allocation6 [shape = 's32[1]{0}', space=sflag, size = 0x4, scoped, tag = 'scoped memory for tpu_custom_call.1']
    #allocation7 [shape = 'u8[131072]{0}', space=vmem, size = 0x20000, scoped, tag = 'output window, operand 0, single buffered']
    #allocation8 [shape = 'u8[1024]{0}', space=vmem, size = 0x400, scoped, tag = 'output window, operand 1, single buffered']
    #allocation9 [shape = 's32[1]{0}', space=sflag, size = 0x4, scoped, tag = 'scoped memory for tpu_custom_call.1']
    %9 = vsyncpa [#allocation3], 0
    %10 = vsyncpa [#allocation6], 0
    %11 = vsyncpa [#allocation4], 0
    %12 = vsyncpa [#allocation9], 0
    // Predicated region
    $region2: #{tpu_custom_call.1} parent=1 // pred_check
      _
    $region3: #{tpu_custom_call.1} parent=1 // pred_check_branch
      %14 = sbr.rel (0) target = $region5
    $region4: #{tpu_custom_call.1} parent=1 // pred_region
      %s16 = ssub.s32 8192, 8192
      %17 = vsyncadd [#allocation3], %s16
      %s18 = sshll.u32 [#allocation2], 4
      %s19 = int_to_ptr.vmem [resolvable:$true] %s18
      %24 = dma.hbm_to_vmem [thread:$0]  %s0, 8192, %s19, [#allocation3], 128, 128, 8
    $region5: #{tpu_custom_call.1} parent=1 // pred_fallthru
      _
    // Predicated region
    $region6: #{tpu_custom_call.1} parent=1 // pred_check
      _
    $region7: #{tpu_custom_call.1} parent=1 // pred_check_branch
      %26 = sbr.rel (0) target = $region9
    $region8: #{tpu_custom_call.1} parent=1 // pred_region
      %s28 = ssub.s32 128, 128
      %29 = vsyncadd [#allocation6], %s28
      %s30 = sshll.u32 [#allocation5], 4
      %s31 = int_to_ptr.vmem [resolvable:$true] %s30
      %36 = dma.hbm_to_vmem [thread:$0]  %s1, 128, %s31, [#allocation6], 64, 64, 4
    $region9: #{tpu_custom_call.1} parent=1 // pred_fallthru
      _
    // Predicated region
    $region10: #{tpu_custom_call.1} parent=1 // pred_check
      _
    $region11: #{tpu_custom_call.1} parent=1 // pred_check_branch
      %38 = sbr.rel (0) target = $region13
    $region12: #{tpu_custom_call.1} parent=1 // pred_region
      %39 = dma.done [#allocation3], 8192
    $region13: #{tpu_custom_call.1} parent=1 // pred_fallthru
      _
    // Predicated region
    $region14: #{tpu_custom_call.1} parent=1 // pred_check
      _
    $region15: #{tpu_custom_call.1} parent=1 // pred_check_branch
      %41 = sbr.rel (0) target = $region17
    $region16: #{tpu_custom_call.1} parent=1 // pred_region
      %42 = dma.done [#allocation6], 128
    $region17: #{tpu_custom_call.1} parent=1 // pred_fallthru
      _
    %v44 = vld [vmem:[#allocation2] sm:$0xff]
    %v45 = vld [vmem:[#allocation2 + $0x8] sm:$0xff]
    %v46 = vld [vmem:[#allocation2 + $0x10] sm:$0xff]
    %v47 = vld [vmem:[#allocation2 + $0x18] sm:$0xff]
    %v48 = vld [vmem:[#allocation2 + $0x20] sm:$0xff]
    %v49 = vld [vmem:[#allocation2 + $0x28] sm:$0xff]
    %v50 = vld [vmem:[#allocation2 + $0x30] sm:$0xff]
    %v51 = vld [vmem:[#allocation2 + $0x38] sm:$0xff]
    %v52 = vld [vmem:[#allocation2 + $0x40] sm:$0xff]
    %v53 = vld [vmem:[#allocation2 + $0x48] sm:$0xff]
    %v54 = vld [vmem:[#allocation2 + $0x50] sm:$0xff]
    %v55 = vld [vmem:[#allocation2 + $0x58] sm:$0xff]
    %v56 = vld [vmem:[#allocation2 + $0x60] sm:$0xff]
    %v57 = vld [vmem:[#allocation2 + $0x68] sm:$0xff]
    %v58 = vld [vmem:[#allocation2 + $0x70] sm:$0xff]
    %v59 = vld [vmem:[#allocation2 + $0x78] sm:$0xff]
    %v60 = vld [vmem:[#allocation2 + $0x80] sm:$0xff]
    %v61 = vld [vmem:[#allocation2 + $0x88] sm:$0xff]
    %v62 = vld [vmem:[#allocation2 + $0x90] sm:$0xff]
    %v63 = vld [vmem:[#allocation2 + $0x98] sm:$0xff]
    %v64 = vld [vmem:[#allocation2 + $0xa0] sm:$0xff]
    %v65 = vld [vmem:[#allocation2 + $0xa8] sm:$0xff]
    %v66 = vld [vmem:[#allocation2 + $0xb0] sm:$0xff]
    %v67 = vld [vmem:[#allocation2 + $0xb8] sm:$0xff]
    %v68 = vld [vmem:[#allocation2 + $0xc0] sm:$0xff]
    %v69 = vld [vmem:[#allocation2 + $0xc8] sm:$0xff]
    %v70 = vld [vmem:[#allocation2 + $0xd0] sm:$0xff]
    %v71 = vld [vmem:[#allocation2 + $0xd8] sm:$0xff]
    %v72 = vld [vmem:[#allocation2 + $0xe0] sm:$0xff]
    %v73 = vld [vmem:[#allocation2 + $0xe8] sm:$0xff]
    %v74 = vld [vmem:[#allocation2 + $0xf0] sm:$0xff]
    %v75 = vld [vmem:[#allocation2 + $0xf8] sm:$0xff]
    %v76 = vld [vmem:[#allocation2 + $0x100] sm:$0xff]
    %v77 = vld [vmem:[#allocation2 + $0x108] sm:$0xff]
    %v78 = vld [vmem:[#allocation2 + $0x110] sm:$0xff]
    %v79 = vld [vmem:[#allocation2 + $0x118] sm:$0xff]
    %v80 = vld [vmem:[#allocation2 + $0x120] sm:$0xff]
    %v81 = vld [vmem:[#allocation2 + $0x128] sm:$0xff]
    %v82 = vld [vmem:[#allocation2 + $0x130] sm:$0xff]
    %v83 = vld [vmem:[#allocation2 + $0x138] sm:$0xff]
    %v84 = vld [vmem:[#allocation2 + $0x140] sm:$0xff]
    %v85 = vld [vmem:[#allocation2 + $0x148] sm:$0xff]
    %v86 = vld [vmem:[#allocation2 + $0x150] sm:$0xff]
    %v87 = vld [vmem:[#allocation2 + $0x158] sm:$0xff]
    %v88 = vld [vmem:[#allocation2 + $0x160] sm:$0xff]
    %v89 = vld [vmem:[#allocation2 + $0x168] sm:$0xff]
    %v90 = vld [vmem:[#allocation2 + $0x170] sm:$0xff]
    %v91 = vld [vmem:[#allocation2 + $0x178] sm:$0xff]
    %v92 = vld [vmem:[#allocation2 + $0x180] sm:$0xff]
    %v93 = vld [vmem:[#allocation2 + $0x188] sm:$0xff]
    %v94 = vld [vmem:[#allocation2 + $0x190] sm:$0xff]
    %v95 = vld [vmem:[#allocation2 + $0x198] sm:$0xff]
    %v96 = vld [vmem:[#allocation2 + $0x1a0] sm:$0xff]
    %v97 = vld [vmem:[#allocation2 + $0x1a8] sm:$0xff]
    %v98 = vld [vmem:[#allocation2 + $0x1b0] sm:$0xff]
    %v99 = vld [vmem:[#allocation2 + $0x1b8] sm:$0xff]
    %v100 = vld [vmem:[#allocation2 + $0x1c0] sm:$0xff]
    %v101 = vld [vmem:[#allocation2 + $0x1c8] sm:$0xff]
    %v102 = vld [vmem:[#allocation2 + $0x1d0] sm:$0xff]
    %v103 = vld [vmem:[#allocation2 + $0x1d8] sm:$0xff]
    %v104 = vld [vmem:[#allocation2 + $0x1e0] sm:$0xff]
    %v105 = vld [vmem:[#allocation2 + $0x1e8] sm:$0xff]
    %v106 = vld [vmem:[#allocation2 + $0x1f0] sm:$0xff]
    %v107 = vld [vmem:[#allocation2 + $0x1f8] sm:$0xff]
    %v108 = vpack.c.bf16 %v45, %v44
    %v109 = vpack.c.bf16 %v47, %v46
    %v110 = vpack.c.bf16 %v49, %v48
    %v111 = vpack.c.bf16 %v51, %v50
    %v112 = vpack.c.bf16 %v53, %v52
    %v113 = vpack.c.bf16 %v55, %v54
    %v114 = vpack.c.bf16 %v57, %v56
    %v115 = vpack.c.bf16 %v59, %v58
    %v116 = vpack.c.bf16 %v61, %v60
    %v117 = vpack.c.bf16 %v63, %v62
    %v118 = vpack.c.bf16 %v65, %v64
    %v119 = vpack.c.bf16 %v67, %v66
    %v120 = vpack.c.bf16 %v69, %v68
    %v121 = vpack.c.bf16 %v71, %v70
    %v122 = vpack.c.bf16 %v73, %v72
    %v123 = vpack.c.bf16 %v75, %v74
    %v124 = vpack.c.bf16 %v77, %v76
    %v125 = vpack.c.bf16 %v79, %v78
    %v126 = vpack.c.bf16 %v81, %v80
    %v127 = vpack.c.bf16 %v83, %v82
    %v128 = vpack.c.bf16 %v85, %v84
    %v129 = vpack.c.bf16 %v87, %v86
    %v130 = vpack.c.bf16 %v89, %v88
    %v131 = vpack.c.bf16 %v91, %v90
    %v132 = vpack.c.bf16 %v93, %v92
    %v133 = vpack.c.bf16 %v95, %v94
    %v134 = vpack.c.bf16 %v97, %v96
    %v135 = vpack.c.bf16 %v99, %v98
    %v136 = vpack.c.bf16 %v101, %v100
    %v137 = vpack.c.bf16 %v103, %v102
    %v138 = vpack.c.bf16 %v105, %v104
    %v139 = vpack.c.bf16 %v107, %v106
    %v140 = vld [vmem:[#allocation5] sm:$0xf]
    %v141 = vld [vmem:[#allocation5 + $0x4] sm:$0xf]
    %v144 = vunpack.c.l.b16 %v140
    %v145 = vunpack.c.l.b16 %v141
    %v146 = vpack.c.b16 %v145, %v144
    %vm148 = vcmask 130048
    %v150 = vsel %vm148, %v108, 0
    %v153 = vsel %vm148, %v109, 0
    %v156 = vsel %vm148, %v110, 0
    %v159 = vsel %vm148, %v111, 0
    %v162 = vsel %vm148, %v112, 0
    %v165 = vsel %vm148, %v113, 0
    %v168 = vsel %vm148, %v114, 0
    %v171 = vsel %vm148, %v115, 0
    %v174 = vsel %vm148, %v116, 0
    %v177 = vsel %vm148, %v117, 0
    %v180 = vsel %vm148, %v118, 0
    %v183 = vsel %vm148, %v119, 0
    %v186 = vsel %vm148, %v120, 0
    %v189 = vsel %vm148, %v121, 0
    %v192 = vsel %vm148, %v122, 0
    %v195 = vsel %vm148, %v123, 0
    %v198 = vsel %vm148, %v124, 0
    %v201 = vsel %vm148, %v125, 0
    %v204 = vsel %vm148, %v126, 0
    %v207 = vsel %vm148, %v127, 0
    %v210 = vsel %vm148, %v128, 0
    %v213 = vsel %vm148, %v129, 0
    %v216 = vsel %vm148, %v130, 0
    %v219 = vsel %vm148, %v131, 0
    %v222 = vsel %vm148, %v132, 0
    %v225 = vsel %vm148, %v133, 0
    %v228 = vsel %vm148, %v134, 0
    %v231 = vsel %vm148, %v135, 0
    %v234 = vsel %vm148, %v136, 0
    %v237 = vsel %vm148, %v137, 0
    %v240 = vsel %vm148, %v138, 0
    %v243 = vsel %vm148, %v139, 0
    %245 = vmatprep.subr.bf16.mxu0 0
    %246 = vmatpush1.bf16.msra.mxu0 %v146
    %247 = vmatprep.subr.bf16.mxu0 0
    %248 = vmatpush1.bf16.msra.mxu0 0
    %249 = vmatprep.subr.bf16.mxu0 0
    %250 = vmatpush1.bf16.msra.mxu0 0
    %251 = vmatprep.subr.bf16.mxu0 0
    %252 = vmatpush1.bf16.msra.mxu0 0
    %253 = vmatprep.subr.bf16.mxu0 0
    %254 = vmatpush1.bf16.msra.mxu0 0
    %255 = vmatprep.subr.bf16.mxu0 0
    %256 = vmatpush1.bf16.msra.mxu0 0
    %257 = vmatprep.subr.bf16.mxu0 0
    %258 = vmatpush1.bf16.msra.mxu0 0
    %259 = vmatprep.subr.bf16.mxu0 0
    %260 = vmatpush1.bf16.msra.mxu0 0
    %261 = vmatprep.subr.bf16.mxu0 0
    %262 = vmatpush1.bf16.msra.mxu0 0
    %263 = vmatprep.subr.bf16.mxu0 0
    %264 = vmatpush1.bf16.msra.mxu0 0
    %265 = vmatprep.subr.bf16.mxu0 0
    %266 = vmatpush1.bf16.msra.mxu0 0
    %267 = vmatprep.subr.bf16.mxu0 0
    %268 = vmatpush1.bf16.msra.mxu0 0
    %269 = vmatprep.subr.bf16.mxu0 0
    %270 = vmatpush1.bf16.msra.mxu0 0
    %271 = vmatprep.subr.bf16.mxu0 0
    %272 = vmatpush1.bf16.msra.mxu0 0
    %273 = vmatprep.subr.bf16.mxu0 0
    %274 = vmatpush1.bf16.msra.mxu0 0
    %275 = vmatprep.subr.bf16.mxu0 0
    %276 = vmatpush1.bf16.msra.mxu0 0
    %277 = vmatprep.mubr.bf16.mxu0 0
    %278 = vmatmul.mubr.bf16.gmra.mrb[0].mxu0 %v150
    %v279 = vpop.f32.mrb[0].mxu0
    %v280 = vadd.f32 0.0, %v279
    %v281 = vpop.f32.mrb[0].mxu0
    %v282 = vpop.f32.mrb[0].mxu0
    %v283 = vadd.f32 0.0, %v282
    %v284 = vpop.f32.mrb[0].mxu0
    %285 = vmatprep.mubr.bf16.mxu0 0
    %286 = vmatmul.mubr.bf16.gmra.mrb[0].mxu0 %v153
    %v287 = vpop.f32.mrb[0].mxu0
    %v288 = vadd.f32 0.0, %v287
    %v289 = vpop.f32.mrb[0].mxu0
    %v290 = vpop.f32.mrb[0].mxu0
    %v291 = vadd.f32 0.0, %v290
    %v292 = vpop.f32.mrb[0].mxu0
    %293 = vmatprep.mubr.bf16.mxu0 0
    %294 = vmatmul.mubr.bf16.gmra.mrb[0].mxu0 %v156
    %v295 = vpop.f32.mrb[0].mxu0
    %v296 = vadd.f32 0.0, %v295
    %v297 = vpop.f32.mrb[0].mxu0
    %v298 = vpop.f32.mrb[0].mxu0
    %v299 = vadd.f32 0.0, %v298
    %v300 = vpop.f32.mrb[0].mxu0
    %301 = vmatprep.mubr.bf16.mxu0 0
    %302 = vmatmul.mubr.bf16.gmra.mrb[0].mxu0 %v159
    %v303 = vpop.f32.mrb[0].mxu0
    %v304 = vadd.f32 0.0, %v303
    %v305 = vpop.f32.mrb[0].mxu0
    %v306 = vpop.f32.mrb[0].mxu0
    %v307 = vadd.f32 0.0, %v306
    %v308 = vpop.f32.mrb[0].mxu0
    %309 = vmatprep.mubr.bf16.mxu0 0
    %310 = vmatmul.mubr.bf16.gmra.mrb[0].mxu0 %v162
    %v311 = vpop.f32.mrb[0].mxu0
    %v312 = vadd.f32 0.0, %v311
    %v313 = vpop.f32.mrb[0].mxu0
    %v314 = vpop.f32.mrb[0].mxu0
    %v315 = vadd.f32 0.0, %v314
    %v316 = vpop.f32.mrb[0].mxu0
    %317 = vmatprep.mubr.bf16.mxu0 0
    %318 = vmatmul.mubr.bf16.gmra.mrb[0].mxu0 %v165
    %v319 = vpop.f32.mrb[0].mxu0
    %v320 = vadd.f32 0.0, %v319
    %v321 = vpop.f32.mrb[0].mxu0
    %v322 = vpop.f32.mrb[0].mxu0
    %v323 = vadd.f32 0.0, %v322
    %v324 = vpop.f32.mrb[0].mxu0
    %325 = vmatprep.mubr.bf16.mxu0 0
    %326 = vmatmul.mubr.bf16.gmra.mrb[0].mxu0 %v168
    %v327 = vpop.f32.mrb[0].mxu0
    %v328 = vadd.f32 0.0, %v327
    %v329 = vpop.f32.mrb[0].mxu0
    %v330 = vpop.f32.mrb[0].mxu0
    %v331 = vadd.f32 0.0, %v330
    %v332 = vpop.f32.mrb[0].mxu0
    %333 = vmatprep.mubr.bf16.mxu0 0
    %334 = vmatmul.mubr.bf16.gmra.mrb[0].mxu0 %v171
    %v335 = vpop.f32.mrb[0].mxu0
    %v336 = vadd.f32 0.0, %v335
    %v337 = vpop.f32.mrb[0].mxu0
    %v338 = vpop.f32.mrb[0].mxu0
    %v339 = vadd.f32 0.0, %v338
    %v340 = vpop.f32.mrb[0].mxu0
    %341 = vmatprep.mubr.bf16.mxu0 0
    %342 = vmatmul.mubr.bf16.gmra.mrb[0].mxu0 %v174
    %v343 = vpop.f32.mrb[0].mxu0
    %v344 = vadd.f32 0.0, %v343
    %v345 = vpop.f32.mrb[0].mxu0
    %v346 = vpop.f32.mrb[0].mxu0
    %v347 = vadd.f32 0.0, %v346
    %v348 = vpop.f32.mrb[0].mxu0
    %349 = vmatprep.mubr.bf16.mxu0 0
    %350 = vmatmul.mubr.bf16.gmra.mrb[0].mxu0 %v177
    %v351 = vpop.f32.mrb[0].mxu0
    %v352 = vadd.f32 0.0, %v351
    %v353 = vpop.f32.mrb[0].mxu0
    %v354 = vpop.f32.mrb[0].mxu0
    %v355 = vadd.f32 0.0, %v354
    %v356 = vpop.f32.mrb[0].mxu0
    %357 = vmatprep.mubr.bf16.mxu0 0
    %358 = vmatmul.mubr.bf16.gmra.mrb[0].mxu0 %v180
    %v359 = vpop.f32.mrb[0].mxu0
    %v360 = vadd.f32 0.0, %v359
    %v361 = vpop.f32.mrb[0].mxu0
    %v362 = vpop.f32.mrb[0].mxu0
    %v363 = vadd.f32 0.0, %v362
    %v364 = vpop.f32.mrb[0].mxu0
    %365 = vmatprep.mubr.bf16.mxu0 0
    %366 = vmatmul.mubr.bf16.gmra.mrb[0].mxu0 %v183
    %v367 = vpop.f32.mrb[0].mxu0
    %v368 = vadd.f32 0.0, %v367
    %v369 = vpop.f32.mrb[0].mxu0
    %v370 = vpop.f32.mrb[0].mxu0
    %v371 = vadd.f32 0.0, %v370
    %v372 = vpop.f32.mrb[0].mxu0
    %373 = vmatprep.mubr.bf16.mxu0 0
    %374 = vmatmul.mubr.bf16.gmra.mrb[0].mxu0 %v186
    %v375 = vpop.f32.mrb[0].mxu0
    %v376 = vadd.f32 0.0, %v375
    %v377 = vpop.f32.mrb[0].mxu0
    %v378 = vpop.f32.mrb[0].mxu0
    %v379 = vadd.f32 0.0, %v378
    %v380 = vpop.f32.mrb[0].mxu0
    %381 = vmatprep.mubr.bf16.mxu0 0
    %382 = vmatmul.mubr.bf16.gmra.mrb[0].mxu0 %v189
    %v383 = vpop.f32.mrb[0].mxu0
    %v384 = vadd.f32 0.0, %v383
    %v385 = vpop.f32.mrb[0].mxu0
    %v386 = vpop.f32.mrb[0].mxu0
    %v387 = vadd.f32 0.0, %v386
    %v388 = vpop.f32.mrb[0].mxu0
    %389 = vmatprep.mubr.bf16.mxu0 0
    %390 = vmatmul.mubr.bf16.gmra.mrb[0].mxu0 %v192
    %v391 = vpop.f32.mrb[0].mxu0
    %v392 = vadd.f32 0.0, %v391
    %v393 = vpop.f32.mrb[0].mxu0
    %v394 = vpop.f32.mrb[0].mxu0
    %v395 = vadd.f32 0.0, %v394
    %v396 = vpop.f32.mrb[0].mxu0
    %397 = vmatprep.mubr.bf16.mxu0 0
    %398 = vmatmul.mubr.bf16.gmra.mrb[0].mxu0 %v195
    %v399 = vpop.f32.mrb[0].mxu0
    %v400 = vadd.f32 0.0, %v399
    %v401 = vpop.f32.mrb[0].mxu0
    %v402 = vpop.f32.mrb[0].mxu0
    %v403 = vadd.f32 0.0, %v402
    %v404 = vpop.f32.mrb[0].mxu0
    %405 = vmatprep.mubr.bf16.mxu0 0
    %406 = vmatmul.mubr.bf16.gmra.mrb[0].mxu0 %v198
    %v407 = vpop.f32.mrb[0].mxu0
    %v408 = vadd.f32 0.0, %v407
    %v409 = vpop.f32.mrb[0].mxu0
    %v410 = vpop.f32.mrb[0].mxu0
    %v411 = vadd.f32 0.0, %v410
    %v412 = vpop.f32.mrb[0].mxu0
    %413 = vmatprep.mubr.bf16.mxu0 0
    %414 = vmatmul.mubr.bf16.gmra.mrb[0].mxu0 %v201
    %v415 = vpop.f32.mrb[0].mxu0
    %v416 = vadd.f32 0.0, %v415
    %v417 = vpop.f32.mrb[0].mxu0
    %v418 = vpop.f32.mrb[0].mxu0
    %v419 = vadd.f32 0.0, %v418
    %v420 = vpop.f32.mrb[0].mxu0
    %421 = vmatprep.mubr.bf16.mxu0 0
    %422 = vmatmul.mubr.bf16.gmra.mrb[0].mxu0 %v204
    %v423 = vpop.f32.mrb[0].mxu0
    %v424 = vadd.f32 0.0, %v423
    %v425 = vpop.f32.mrb[0].mxu0
    %v426 = vpop.f32.mrb[0].mxu0
    %v427 = vadd.f32 0.0, %v426
    %v428 = vpop.f32.mrb[0].mxu0
    %429 = vmatprep.mubr.bf16.mxu0 0
    %430 = vmatmul.mubr.bf16.gmra.mrb[0].mxu0 %v207
    %v431 = vpop.f32.mrb[0].mxu0
    %v432 = vadd.f32 0.0, %v431
    %v433 = vpop.f32.mrb[0].mxu0
    %v434 = vpop.f32.mrb[0].mxu0
    %v435 = vadd.f32 0.0, %v434
    %v436 = vpop.f32.mrb[0].mxu0
    %437 = vmatprep.mubr.bf16.mxu0 0
    %438 = vmatmul.mubr.bf16.gmra.mrb[0].mxu0 %v210
    %v439 = vpop.f32.mrb[0].mxu0
    %v440 = vadd.f32 0.0, %v439
    %v441 = vpop.f32.mrb[0].mxu0
    %v442 = vpop.f32.mrb[0].mxu0
    %v443 = vadd.f32 0.0, %v442
    %v444 = vpop.f32.mrb[0].mxu0
    %445 = vmatprep.mubr.bf16.mxu0 0
    %446 = vmatmul.mubr.bf16.gmra.mrb[0].mxu0 %v213
    %v447 = vpop.f32.mrb[0].mxu0
    %v448 = vadd.f32 0.0, %v447
    %v449 = vpop.f32.mrb[0].mxu0
    %v450 = vpop.f32.mrb[0].mxu0
    %v451 = vadd.f32 0.0, %v450
    %v452 = vpop.f32.mrb[0].mxu0
    %453 = vmatprep.mubr.bf16.mxu0 0
    %454 = vmatmul.mubr.bf16.gmra.mrb[0].mxu0 %v216
    %v455 = vpop.f32.mrb[0].mxu0
    %v456 = vadd.f32 0.0, %v455
    %v457 = vpop.f32.mrb[0].mxu0
    %v458 = vpop.f32.mrb[0].mxu0
    %v459 = vadd.f32 0.0, %v458
    %v460 = vpop.f32.mrb[0].mxu0
    %461 = vmatprep.mubr.bf16.mxu0 0
    %462 = vmatmul.mubr.bf16.gmra.mrb[0].mxu0 %v219
    %v463 = vpop.f32.mrb[0].mxu0
    %v464 = vadd.f32 0.0, %v463
    %v465 = vpop.f32.mrb[0].mxu0
    %v466 = vpop.f32.mrb[0].mxu0
    %v467 = vadd.f32 0.0, %v466
    %v468 = vpop.f32.mrb[0].mxu0
    %469 = vmatprep.mubr.bf16.mxu0 0
    %470 = vmatmul.mubr.bf16.gmra.mrb[0].mxu0 %v222
    %v471 = vpop.f32.mrb[0].mxu0
    %v472 = vadd.f32 0.0, %v471
    %v473 = vpop.f32.mrb[0].mxu0
    %v474 = vpop.f32.mrb[0].mxu0
    %v475 = vadd.f32 0.0, %v474
    %v476 = vpop.f32.mrb[0].mxu0
    %477 = vmatprep.mubr.bf16.mxu0 0
    %478 = vmatmul.mubr.bf16.gmra.mrb[0].mxu0 %v225
    %v479 = vpop.f32.mrb[0].mxu0
    %v480 = vadd.f32 0.0, %v479
    %v481 = vpop.f32.mrb[0].mxu0
    %v482 = vpop.f32.mrb[0].mxu0
    %v483 = vadd.f32 0.0, %v482
    %v484 = vpop.f32.mrb[0].mxu0
    %485 = vmatprep.mubr.bf16.mxu0 0
    %486 = vmatmul.mubr.bf16.gmra.mrb[0].mxu0 %v228
    %v487 = vpop.f32.mrb[0].mxu0
    %v488 = vadd.f32 0.0, %v487
    %v489 = vpop.f32.mrb[0].mxu0
    %v490 = vpop.f32.mrb[0].mxu0
    %v491 = vadd.f32 0.0, %v490
    %v492 = vpop.f32.mrb[0].mxu0
    %493 = vmatprep.mubr.bf16.mxu0 0
    %494 = vmatmul.mubr.bf16.gmra.mrb[0].mxu0 %v231
    %v495 = vpop.f32.mrb[0].mxu0
    %v496 = vadd.f32 0.0, %v495
    %v497 = vpop.f32.mrb[0].mxu0
    %v498 = vpop.f32.mrb[0].mxu0
    %v499 = vadd.f32 0.0, %v498
    %v500 = vpop.f32.mrb[0].mxu0
    %501 = vmatprep.mubr.bf16.mxu0 0
    %502 = vmatmul.mubr.bf16.gmra.mrb[0].mxu0 %v234
    %v503 = vpop.f32.mrb[0].mxu0
    %v504 = vadd.f32 0.0, %v503
    %v505 = vpop.f32.mrb[0].mxu0
    %v506 = vpop.f32.mrb[0].mxu0
    %v507 = vadd.f32 0.0, %v506
    %v508 = vpop.f32.mrb[0].mxu0
    %509 = vmatprep.mubr.bf16.mxu0 0
    %510 = vmatmul.mubr.bf16.gmra.mrb[0].mxu0 %v237
    %v511 = vpop.f32.mrb[0].mxu0
    %v512 = vadd.f32 0.0, %v511
    %v513 = vpop.f32.mrb[0].mxu0
    %v514 = vpop.f32.mrb[0].mxu0
    %v515 = vadd.f32 0.0, %v514
    %v516 = vpop.f32.mrb[0].mxu0
    %517 = vmatprep.mubr.bf16.mxu0 0
    %518 = vmatmul.mubr.bf16.gmra.mrb[0].mxu0 %v240
    %v519 = vpop.f32.mrb[0].mxu0
    %v520 = vadd.f32 0.0, %v519
    %v521 = vpop.f32.mrb[0].mxu0
    %v522 = vpop.f32.mrb[0].mxu0
    %v523 = vadd.f32 0.0, %v522
    %v524 = vpop.f32.mrb[0].mxu0
    %525 = vmatprep.mubr.bf16.mxu0 0
    %526 = vmatmul.mubr.bf16.gmra.mrb[0].mxu0 %v243
    %v527 = vpop.f32.mrb[0].mxu0
    %v528 = vadd.f32 0.0, %v527
    %v529 = vpop.f32.mrb[0].mxu0
    %v530 = vpop.f32.mrb[0].mxu0
    %v531 = vadd.f32 0.0, %v530
    %v532 = vpop.f32.mrb[0].mxu0
    %533 = vdwg.mxu0
    %v534 = vpack.c.bf16 %v283, %v280
    %v535 = vpack.c.bf16 %v291, %v288
    %v536 = vpack.c.bf16 %v299, %v296
    %v537 = vpack.c.bf16 %v307, %v304
    %v538 = vpack.c.bf16 %v315, %v312
    %v539 = vpack.c.bf16 %v323, %v320
    %v540 = vpack.c.bf16 %v331, %v328
    %v541 = vpack.c.bf16 %v339, %v336
    %v542 = vpack.c.bf16 %v347, %v344
    %v543 = vpack.c.bf16 %v355, %v352
    %v544 = vpack.c.bf16 %v363, %v360
    %v545 = vpack.c.bf16 %v371, %v368
    %v546 = vpack.c.bf16 %v379, %v376
    %v547 = vpack.c.bf16 %v387, %v384
    %v548 = vpack.c.bf16 %v395, %v392
    %v549 = vpack.c.bf16 %v403, %v400
    %v550 = vpack.c.bf16 %v411, %v408
    %v551 = vpack.c.bf16 %v419, %v416
    %v552 = vpack.c.bf16 %v427, %v424
    %v553 = vpack.c.bf16 %v435, %v432
    %v554 = vpack.c.bf16 %v443, %v440
    %v555 = vpack.c.bf16 %v451, %v448
    %v556 = vpack.c.bf16 %v459, %v456
    %v557 = vpack.c.bf16 %v467, %v464
    %v558 = vpack.c.bf16 %v475, %v472
    %v559 = vpack.c.bf16 %v483, %v480
    %v560 = vpack.c.bf16 %v491, %v488
    %v561 = vpack.c.bf16 %v499, %v496
    %v562 = vpack.c.bf16 %v507, %v504
    %v563 = vpack.c.bf16 %v515, %v512
    %v564 = vpack.c.bf16 %v523, %v520
    %v565 = vpack.c.bf16 %v531, %v528
    %v598 = vunpack.c.l.b16 %v534
    %v599 = vunpack.c.h.b16 %v534
    %v600 = vunpack.c.l.b16 %v535
    %v601 = vunpack.c.h.b16 %v535
    %v602 = vunpack.c.l.b16 %v536
    %v603 = vunpack.c.h.b16 %v536
    %v604 = vunpack.c.l.b16 %v537
    %v605 = vunpack.c.h.b16 %v537
    %v606 = vunpack.c.l.b16 %v538
    %v607 = vunpack.c.h.b16 %v538
    %v608 = vunpack.c.l.b16 %v539
    %v609 = vunpack.c.h.b16 %v539
    %v610 = vunpack.c.l.b16 %v540
    %v611 = vunpack.c.h.b16 %v540
    %v612 = vunpack.c.l.b16 %v541
    %v613 = vunpack.c.h.b16 %v541
    %v614 = vunpack.c.l.b16 %v542
    %v615 = vunpack.c.h.b16 %v542
    %v616 = vunpack.c.l.b16 %v543
    %v617 = vunpack.c.h.b16 %v543
    %v618 = vunpack.c.l.b16 %v544
    %v619 = vunpack.c.h.b16 %v544
    %v620 = vunpack.c.l.b16 %v545
    %v621 = vunpack.c.h.b16 %v545
    %v622 = vunpack.c.l.b16 %v546
    %v623 = vunpack.c.h.b16 %v546
    %v624 = vunpack.c.l.b16 %v547
    %v625 = vunpack.c.h.b16 %v547
    %v626 = vunpack.c.l.b16 %v548
    %v627 = vunpack.c.h.b16 %v548
    %v628 = vunpack.c.l.b16 %v549
    %v629 = vunpack.c.h.b16 %v549
    %v630 = vunpack.c.l.b16 %v550
    %v631 = vunpack.c.h.b16 %v550
    %v632 = vunpack.c.l.b16 %v551
    %v633 = vunpack.c.h.b16 %v551
    %v634 = vunpack.c.l.b16 %v552
    %v635 = vunpack.c.h.b16 %v552
    %v636 = vunpack.c.l.b16 %v553
    %v637 = vunpack.c.h.b16 %v553
    %v638 = vunpack.c.l.b16 %v554
    %v639 = vunpack.c.h.b16 %v554
    %v640 = vunpack.c.l.b16 %v555
    %v641 = vunpack.c.h.b16 %v555
    %v642 = vunpack.c.l.b16 %v556
    %v643 = vunpack.c.h.b16 %v556
    %v644 = vunpack.c.l.b16 %v557
    %v645 = vunpack.c.h.b16 %v557
    %v646 = vunpack.c.l.b16 %v558
    %v647 = vunpack.c.h.b16 %v558
    %v648 = vunpack.c.l.b16 %v559
    %v649 = vunpack.c.h.b16 %v559
    %v650 = vunpack.c.l.b16 %v560
    %v651 = vunpack.c.h.b16 %v560
    %v652 = vunpack.c.l.b16 %v561
    %v653 = vunpack.c.h.b16 %v561
    %v654 = vunpack.c.l.b16 %v562
    %v655 = vunpack.c.h.b16 %v562
    %v656 = vunpack.c.l.b16 %v563
    %v657 = vunpack.c.h.b16 %v563
    %v658 = vunpack.c.l.b16 %v564
    %v659 = vunpack.c.h.b16 %v564
    %v660 = vunpack.c.l.b16 %v565
    %v661 = vunpack.c.h.b16 %v565
    %v662 = vpack.c.b16 %v598, %v598
    %v663 = vpack.c.b16 %v599, %v599
    %v664 = vpack.c.b16 %v600, %v600
    %v665 = vpack.c.b16 %v601, %v601
    %v666 = vpack.c.b16 %v602, %v602
    %v667 = vpack.c.b16 %v603, %v603
    %v668 = vpack.c.b16 %v604, %v604
    %v669 = vpack.c.b16 %v605, %v605
    %v670 = vpack.c.b16 %v606, %v606
    %v671 = vpack.c.b16 %v607, %v607
    %v672 = vpack.c.b16 %v608, %v608
    %v673 = vpack.c.b16 %v609, %v609
    %v674 = vpack.c.b16 %v610, %v610
    %v675 = vpack.c.b16 %v611, %v611
    %v676 = vpack.c.b16 %v612, %v612
    %v677 = vpack.c.b16 %v613, %v613
    %v678 = vpack.c.b16 %v614, %v614
    %v679 = vpack.c.b16 %v615, %v615
    %v680 = vpack.c.b16 %v616, %v616
    %v681 = vpack.c.b16 %v617, %v617
    %v682 = vpack.c.b16 %v618, %v618
    %v683 = vpack.c.b16 %v619, %v619
    %v684 = vpack.c.b16 %v620, %v620
    %v685 = vpack.c.b16 %v621, %v621
    %v686 = vpack.c.b16 %v622, %v622
    %v687 = vpack.c.b16 %v623, %v623
    %v688 = vpack.c.b16 %v624, %v624
    %v689 = vpack.c.b16 %v625, %v625
    %v690 = vpack.c.b16 %v626, %v626
    %v691 = vpack.c.b16 %v627, %v627
    %v692 = vpack.c.b16 %v628, %v628
    %v693 = vpack.c.b16 %v629, %v629
    %v694 = vpack.c.b16 %v630, %v630
    %v695 = vpack.c.b16 %v631, %v631
    %v696 = vpack.c.b16 %v632, %v632
    %v697 = vpack.c.b16 %v633, %v633
    %v698 = vpack.c.b16 %v634, %v634
    %v699 = vpack.c.b16 %v635, %v635
    %v700 = vpack.c.b16 %v636, %v636
    %v701 = vpack.c.b16 %v637, %v637
    %v702 = vpack.c.b16 %v638, %v638
    %v703 = vpack.c.b16 %v639, %v639
    %v704 = vpack.c.b16 %v640, %v640
    %v705 = vpack.c.b16 %v641, %v641
    %v706 = vpack.c.b16 %v642, %v642
    %v707 = vpack.c.b16 %v643, %v643
    %v708 = vpack.c.b16 %v644, %v644
    %v709 = vpack.c.b16 %v645, %v645
    %v710 = vpack.c.b16 %v646, %v646
    %v711 = vpack.c.b16 %v647, %v647
    %v712 = vpack.c.b16 %v648, %v648
    %v713 = vpack.c.b16 %v649, %v649
    %v714 = vpack.c.b16 %v650, %v650
    %v715 = vpack.c.b16 %v651, %v651
    %v716 = vpack.c.b16 %v652, %v652
    %v717 = vpack.c.b16 %v653, %v653
    %v718 = vpack.c.b16 %v654, %v654
    %v719 = vpack.c.b16 %v655, %v655
    %v720 = vpack.c.b16 %v656, %v656
    %v721 = vpack.c.b16 %v657, %v657
    %v722 = vpack.c.b16 %v658, %v658
    %v723 = vpack.c.b16 %v659, %v659
    %v724 = vpack.c.b16 %v660, %v660
    %v725 = vpack.c.b16 %v661, %v661
    %vm790 = vcmask 27648
    %791 = vst.msk [vmem:[#allocation7] sm:$0xf] %vm790, %v662
    %792 = vst.msk [vmem:[#allocation7 + $0x4] sm:$0xf] %vm790, %v663
    %793 = vst.msk [vmem:[#allocation7 + $0x8] sm:$0xf] %vm790, %v664
    %794 = vst.msk [vmem:[#allocation7 + $0xc] sm:$0xf] %vm790, %v665
    %795 = vst.msk [vmem:[#allocation7 + $0x10] sm:$0xf] %vm790, %v666
    %796 = vst.msk [vmem:[#allocation7 + $0x14] sm:$0xf] %vm790, %v667
    %797 = vst.msk [vmem:[#allocation7 + $0x18] sm:$0xf] %vm790, %v668
    %798 = vst.msk [vmem:[#allocation7 + $0x1c] sm:$0xf] %vm790, %v669
    %799 = vst.msk [vmem:[#allocation7 + $0x20] sm:$0xf] %vm790, %v670
    %800 = vst.msk [vmem:[#allocation7 + $0x24] sm:$0xf] %vm790, %v671
    %801 = vst.msk [vmem:[#allocation7 + $0x28] sm:$0xf] %vm790, %v672
    %802 = vst.msk [vmem:[#allocation7 + $0x2c] sm:$0xf] %vm790, %v673
    %803 = vst.msk [vmem:[#allocation7 + $0x30] sm:$0xf] %vm790, %v674
    %804 = vst.msk [vmem:[#allocation7 + $0x34] sm:$0xf] %vm790, %v675
    %805 = vst.msk [vmem:[#allocation7 + $0x38] sm:$0xf] %vm790, %v676
    %806 = vst.msk [vmem:[#allocation7 + $0x3c] sm:$0xf] %vm790, %v677
    %807 = vst.msk [vmem:[#allocation7 + $0x40] sm:$0xf] %vm790, %v678
    %808 = vst.msk [vmem:[#allocation7 + $0x44] sm:$0xf] %vm790, %v679
    %809 = vst.msk [vmem:[#allocation7 + $0x48] sm:$0xf] %vm790, %v680
    %810 = vst.msk [vmem:[#allocation7 + $0x4c] sm:$0xf] %vm790, %v681
    %811 = vst.msk [vmem:[#allocation7 + $0x50] sm:$0xf] %vm790, %v682
    %812 = vst.msk [vmem:[#allocation7 + $0x54] sm:$0xf] %vm790, %v683
    %813 = vst.msk [vmem:[#allocation7 + $0x58] sm:$0xf] %vm790, %v684
    %814 = vst.msk [vmem:[#allocation7 + $0x5c] sm:$0xf] %vm790, %v685
    %815 = vst.msk [vmem:[#allocation7 + $0x60] sm:$0xf] %vm790, %v686
    %816 = vst.msk [vmem:[#allocation7 + $0x64] sm:$0xf] %vm790, %v687
    %817 = vst.msk [vmem:[#allocation7 + $0x68] sm:$0xf] %vm790, %v688
    %818 = vst.msk [vmem:[#allocation7 + $0x6c] sm:$0xf] %vm790, %v689
    %819 = vst.msk [vmem:[#allocation7 + $0x70] sm:$0xf] %vm790, %v690
    %820 = vst.msk [vmem:[#allocation7 + $0x74] sm:$0xf] %vm790, %v691
    %821 = vst.msk [vmem:[#allocation7 + $0x78] sm:$0xf] %vm790, %v692
    %822 = vst.msk [vmem:[#allocation7 + $0x7c] sm:$0xf] %vm790, %v693
    %823 = vst.msk [vmem:[#allocation7 + $0x80] sm:$0xf] %vm790, %v694
    %824 = vst.msk [vmem:[#allocation7 + $0x84] sm:$0xf] %vm790, %v695
    %825 = vst.msk [vmem:[#allocation7 + $0x88] sm:$0xf] %vm790, %v696
    %826 = vst.msk [vmem:[#allocation7 + $0x8c] sm:$0xf] %vm790, %v697
    %827 = vst.msk [vmem:[#allocation7 + $0x90] sm:$0xf] %vm790, %v698
    %828 = vst.msk [vmem:[#allocation7 + $0x94] sm:$0xf] %vm790, %v699
    %829 = vst.msk [vmem:[#allocation7 + $0x98] sm:$0xf] %vm790, %v700
    %830 = vst.msk [vmem:[#allocation7 + $0x9c] sm:$0xf] %vm790, %v701
    %831 = vst.msk [vmem:[#allocation7 + $0xa0] sm:$0xf] %vm790, %v702
    %832 = vst.msk [vmem:[#allocation7 + $0xa4] sm:$0xf] %vm790, %v703
    %833 = vst.msk [vmem:[#allocation7 + $0xa8] sm:$0xf] %vm790, %v704
    %834 = vst.msk [vmem:[#allocation7 + $0xac] sm:$0xf] %vm790, %v705
    %835 = vst.msk [vmem:[#allocation7 + $0xb0] sm:$0xf] %vm790, %v706
    %836 = vst.msk [vmem:[#allocation7 + $0xb4] sm:$0xf] %vm790, %v707
    %837 = vst.msk [vmem:[#allocation7 + $0xb8] sm:$0xf] %vm790, %v708
    %838 = vst.msk [vmem:[#allocation7 + $0xbc] sm:$0xf] %vm790, %v709
    %839 = vst.msk [vmem:[#allocation7 + $0xc0] sm:$0xf] %vm790, %v710
    %840 = vst.msk [vmem:[#allocation7 + $0xc4] sm:$0xf] %vm790, %v711
    %841 = vst.msk [vmem:[#allocation7 + $0xc8] sm:$0xf] %vm790, %v712
    %842 = vst.msk [vmem:[#allocation7 + $0xcc] sm:$0xf] %vm790, %v713
    %843 = vst.msk [vmem:[#allocation7 + $0xd0] sm:$0xf] %vm790, %v714
    %844 = vst.msk [vmem:[#allocation7 + $0xd4] sm:$0xf] %vm790, %v715
    %845 = vst.msk [vmem:[#allocation7 + $0xd8] sm:$0xf] %vm790, %v716
    %846 = vst.msk [vmem:[#allocation7 + $0xdc] sm:$0xf] %vm790, %v717
    %847 = vst.msk [vmem:[#allocation7 + $0xe0] sm:$0xf] %vm790, %v718
    %848 = vst.msk [vmem:[#allocation7 + $0xe4] sm:$0xf] %vm790, %v719
    %849 = vst.msk [vmem:[#allocation7 + $0xe8] sm:$0xf] %vm790, %v720
    %850 = vst.msk [vmem:[#allocation7 + $0xec] sm:$0xf] %vm790, %v721
    %851 = vst.msk [vmem:[#allocation7 + $0xf0] sm:$0xf] %vm790, %v722
    %852 = vst.msk [vmem:[#allocation7 + $0xf4] sm:$0xf] %vm790, %v723
    %853 = vst.msk [vmem:[#allocation7 + $0xf8] sm:$0xf] %vm790, %v724
    %854 = vst.msk [vmem:[#allocation7 + $0xfc] sm:$0xf] %vm790, %v725
    %vm855 = vcmask 31744
    %v856 = vsel %vm855, %v280, 0.0
    %v857 = vsel %vm855, %v283, 0.0
    %v858 = vadd.f32 %v856, %v857
    %v859 = vsel %vm855, %v288, 0.0
    %v860 = vadd.f32 %v858, %v859
    %v861 = vsel %vm855, %v291, 0.0
    %v862 = vadd.f32 %v860, %v861
    %v863 = vsel %vm855, %v296, 0.0
    %v864 = vadd.f32 %v862, %v863
    %v865 = vsel %vm855, %v299, 0.0
    %v866 = vadd.f32 %v864, %v865
    %v867 = vsel %vm855, %v304, 0.0
    %v868 = vadd.f32 %v866, %v867
    %v869 = vsel %vm855, %v307, 0.0
    %v870 = vadd.f32 %v868, %v869
    %v871 = vsel %vm855, %v312, 0.0
    %v872 = vadd.f32 %v870, %v871
    %v873 = vsel %vm855, %v315, 0.0
    %v874 = vadd.f32 %v872, %v873
    %v875 = vsel %vm855, %v320, 0.0
    %v876 = vadd.f32 %v874, %v875
    %v877 = vsel %vm855, %v323, 0.0
    %v878 = vadd.f32 %v876, %v877
    %v879 = vsel %vm855, %v328, 0.0
    %v880 = vadd.f32 %v878, %v879
    %v881 = vsel %vm855, %v331, 0.0
    %v882 = vadd.f32 %v880, %v881
    %v883 = vsel %vm855, %v336, 0.0
    %v884 = vadd.f32 %v882, %v883
    %v885 = vsel %vm855, %v339, 0.0
    %v886 = vadd.f32 %v884, %v885
    %v887 = vsel %vm855, %v344, 0.0
    %v888 = vadd.f32 %v886, %v887
    %v889 = vsel %vm855, %v347, 0.0
    %v890 = vadd.f32 %v888, %v889
    %v891 = vsel %vm855, %v352, 0.0
    %v892 = vadd.f32 %v890, %v891
    %v893 = vsel %vm855, %v355, 0.0
    %v894 = vadd.f32 %v892, %v893
    %v895 = vsel %vm855, %v360, 0.0
    %v896 = vadd.f32 %v894, %v895
    %v897 = vsel %vm855, %v363, 0.0
    %v898 = vadd.f32 %v896, %v897
    %v899 = vsel %vm855, %v368, 0.0
    %v900 = vadd.f32 %v898, %v899
    %v901 = vsel %vm855, %v371, 0.0
    %v902 = vadd.f32 %v900, %v901
    %v903 = vsel %vm855, %v376, 0.0
    %v904 = vadd.f32 %v902, %v903
    %v905 = vsel %vm855, %v379, 0.0
    %v906 = vadd.f32 %v904, %v905
    %v907 = vsel %vm855, %v384, 0.0
    %v908 = vadd.f32 %v906, %v907
    %v909 = vsel %vm855, %v387, 0.0
    %v910 = vadd.f32 %v908, %v909
    %v911 = vsel %vm855, %v392, 0.0
    %v912 = vadd.f32 %v910, %v911
    %v913 = vsel %vm855, %v395, 0.0
    %v914 = vadd.f32 %v912, %v913
    %v915 = vsel %vm855, %v400, 0.0
    %v916 = vadd.f32 %v914, %v915
    %v917 = vsel %vm855, %v403, 0.0
    %v918 = vadd.f32 %v916, %v917
    %v919 = vsel %vm855, %v408, 0.0
    %v920 = vadd.f32 %v918, %v919
    %v921 = vsel %vm855, %v411, 0.0
    %v922 = vadd.f32 %v920, %v921
    %v923 = vsel %vm855, %v416, 0.0
    %v924 = vadd.f32 %v922, %v923
    %v925 = vsel %vm855, %v419, 0.0
    %v926 = vadd.f32 %v924, %v925
    %v927 = vsel %vm855, %v424, 0.0
    %v928 = vadd.f32 %v926, %v927
    %v929 = vsel %vm855, %v427, 0.0
    %v930 = vadd.f32 %v928, %v929
    %v931 = vsel %vm855, %v432, 0.0
    %v932 = vadd.f32 %v930, %v931
    %v933 = vsel %vm855, %v435, 0.0
    %v934 = vadd.f32 %v932, %v933
    %v935 = vsel %vm855, %v440, 0.0
    %v936 = vadd.f32 %v934, %v935
    %v937 = vsel %vm855, %v443, 0.0
    %v938 = vadd.f32 %v936, %v937
    %v939 = vsel %vm855, %v448, 0.0
    %v940 = vadd.f32 %v938, %v939
    %v941 = vsel %vm855, %v451, 0.0
    %v942 = vadd.f32 %v940, %v941
    %v943 = vsel %vm855, %v456, 0.0
    %v944 = vadd.f32 %v942, %v943
    %v945 = vsel %vm855, %v459, 0.0
    %v946 = vadd.f32 %v944, %v945
    %v947 = vsel %vm855, %v464, 0.0
    %v948 = vadd.f32 %v946, %v947
    %v949 = vsel %vm855, %v467, 0.0
    %v950 = vadd.f32 %v948, %v949
    %v951 = vsel %vm855, %v472, 0.0
    %v952 = vadd.f32 %v950, %v951
    %v953 = vsel %vm855, %v475, 0.0
    %v954 = vadd.f32 %v952, %v953
    %v955 = vsel %vm855, %v480, 0.0
    %v956 = vadd.f32 %v954, %v955
    %v957 = vsel %vm855, %v483, 0.0
    %v958 = vadd.f32 %v956, %v957
    %v959 = vsel %vm855, %v488, 0.0
    %v960 = vadd.f32 %v958, %v959
    %v961 = vsel %vm855, %v491, 0.0
    %v962 = vadd.f32 %v960, %v961
    %v963 = vsel %vm855, %v496, 0.0
    %v964 = vadd.f32 %v962, %v963
    %v965 = vsel %vm855, %v499, 0.0
    %v966 = vadd.f32 %v964, %v965
    %v967 = vsel %vm855, %v504, 0.0
    %v968 = vadd.f32 %v966, %v967
    %v969 = vsel %vm855, %v507, 0.0
    %v970 = vadd.f32 %v968, %v969
    %v971 = vsel %vm855, %v512, 0.0
    %v972 = vadd.f32 %v970, %v971
    %v973 = vsel %vm855, %v515, 0.0
    %v974 = vadd.f32 %v972, %v973
    %v975 = vsel %vm855, %v520, 0.0
    %v976 = vadd.f32 %v974, %v975
    %v977 = vsel %vm855, %v523, 0.0
    %v978 = vadd.f32 %v976, %v977
    %v979 = vsel %vm855, %v528, 0.0
    %v980 = vadd.f32 %v978, %v979
    %v981 = vsel %vm855, %v531, 0.0
    %v982 = vadd.f32 %v980, %v981
    %v983 = vrot.slane %v982, 4
    %v984 = vadd.f32 %v982, %v983
    %v985 = vrot.slane %v984, 2
    %v986 = vadd.f32 %v984, %v985
    %v987 = vrot.slane %v986, 1
    %v988 = vadd.f32 %v986, %v987
    %v989 = vmul.f32 %v280, %v280
    %v990 = vmul.f32 %v283, %v283
    %v991 = vmul.f32 %v288, %v288
    %v992 = vmul.f32 %v291, %v291
    %v993 = vmul.f32 %v296, %v296
    %v994 = vmul.f32 %v299, %v299
    %v995 = vmul.f32 %v304, %v304
    %v996 = vmul.f32 %v307, %v307
    %v997 = vmul.f32 %v312, %v312
    %v998 = vmul.f32 %v315, %v315
    %v999 = vmul.f32 %v320, %v320
    %v1000 = vmul.f32 %v323, %v323
    %v1001 = vmul.f32 %v328, %v328
    %v1002 = vmul.f32 %v331, %v331
    %v1003 = vmul.f32 %v336, %v336
    %v1004 = vmul.f32 %v339, %v339
    %v1005 = vmul.f32 %v344, %v344
    %v1006 = vmul.f32 %v347, %v347
    %v1007 = vmul.f32 %v352, %v352
    %v1008 = vmul.f32 %v355, %v355
    %v1009 = vmul.f32 %v360, %v360
    %v1010 = vmul.f32 %v363, %v363
    %v1011 = vmul.f32 %v368, %v368
    %v1012 = vmul.f32 %v371, %v371
    %v1013 = vmul.f32 %v376, %v376
    %v1014 = vmul.f32 %v379, %v379
    %v1015 = vmul.f32 %v384, %v384
    %v1016 = vmul.f32 %v387, %v387
    %v1017 = vmul.f32 %v392, %v392
    %v1018 = vmul.f32 %v395, %v395
    %v1019 = vmul.f32 %v400, %v400
    %v1020 = vmul.f32 %v403, %v403
    %v1021 = vmul.f32 %v408, %v408
    %v1022 = vmul.f32 %v411, %v411
    %v1023 = vmul.f32 %v416, %v416
    %v1024 = vmul.f32 %v419, %v419
    %v1025 = vmul.f32 %v424, %v424
    %v1026 = vmul.f32 %v427, %v427
    %v1027 = vmul.f32 %v432, %v432
    %v1028 = vmul.f32 %v435, %v435
    %v1029 = vmul.f32 %v440, %v440
    %v1030 = vmul.f32 %v443, %v443
    %v1031 = vmul.f32 %v448, %v448
    %v1032 = vmul.f32 %v451, %v451
    %v1033 = vmul.f32 %v456, %v456
    %v1034 = vmul.f32 %v459, %v459
    %v1035 = vmul.f32 %v464, %v464
    %v1036 = vmul.f32 %v467, %v467
    %v1037 = vmul.f32 %v472, %v472
    %v1038 = vmul.f32 %v475, %v475
    %v1039 = vmul.f32 %v480, %v480
    %v1040 = vmul.f32 %v483, %v483
    %v1041 = vmul.f32 %v488, %v488
    %v1042 = vmul.f32 %v491, %v491
    %v1043 = vmul.f32 %v496, %v496
    %v1044 = vmul.f32 %v499, %v499
    %v1045 = vmul.f32 %v504, %v504
    %v1046 = vmul.f32 %v507, %v507
    %v1047 = vmul.f32 %v512, %v512
    %v1048 = vmul.f32 %v515, %v515
    %v1049 = vmul.f32 %v520, %v520
    %v1050 = vmul.f32 %v523, %v523
    %v1051 = vmul.f32 %v528, %v528
    %v1052 = vmul.f32 %v531, %v531
    %v1053 = vsel %vm855, %v989, 0.0
    %v1054 = vsel %vm855, %v990, 0.0
    %v1055 = vadd.f32 %v1053, %v1054
    %v1056 = vsel %vm855, %v991, 0.0
    %v1057 = vadd.f32 %v1055, %v1056
    %v1058 = vsel %vm855, %v992, 0.0
    %v1059 = vadd.f32 %v1057, %v1058
    %v1060 = vsel %vm855, %v993, 0.0
    %v1061 = vadd.f32 %v1059, %v1060
    %v1062 = vsel %vm855, %v994, 0.0
    %v1063 = vadd.f32 %v1061, %v1062
    %v1064 = vsel %vm855, %v995, 0.0
    %v1065 = vadd.f32 %v1063, %v1064
    %v1066 = vsel %vm855, %v996, 0.0
    %v1067 = vadd.f32 %v1065, %v1066
    %v1068 = vsel %vm855, %v997, 0.0
    %v1069 = vadd.f32 %v1067, %v1068
    %v1070 = vsel %vm855, %v998, 0.0
    %v1071 = vadd.f32 %v1069, %v1070
    %v1072 = vsel %vm855, %v999, 0.0
    %v1073 = vadd.f32 %v1071, %v1072
    %v1074 = vsel %vm855, %v1000, 0.0
    %v1075 = vadd.f32 %v1073, %v1074
    %v1076 = vsel %vm855, %v1001, 0.0
    %v1077 = vadd.f32 %v1075, %v1076
    %v1078 = vsel %vm855, %v1002, 0.0
    %v1079 = vadd.f32 %v1077, %v1078
    %v1080 = vsel %vm855, %v1003, 0.0
    %v1081 = vadd.f32 %v1079, %v1080
    %v1082 = vsel %vm855, %v1004, 0.0
    %v1083 = vadd.f32 %v1081, %v1082
    %v1084 = vsel %vm855, %v1005, 0.0
    %v1085 = vadd.f32 %v1083, %v1084
    %v1086 = vsel %vm855, %v1006, 0.0
    %v1087 = vadd.f32 %v1085, %v1086
    %v1088 = vsel %vm855, %v1007, 0.0
    %v1089 = vadd.f32 %v1087, %v1088
    %v1090 = vsel %vm855, %v1008, 0.0
    %v1091 = vadd.f32 %v1089, %v1090
    %v1092 = vsel %vm855, %v1009, 0.0
    %v1093 = vadd.f32 %v1091, %v1092
    %v1094 = vsel %vm855, %v1010, 0.0
    %v1095 = vadd.f32 %v1093, %v1094
    %v1096 = vsel %vm855, %v1011, 0.0
    %v1097 = vadd.f32 %v1095, %v1096
    %v1098 = vsel %vm855, %v1012, 0.0
    %v1099 = vadd.f32 %v1097, %v1098
    %v1100 = vsel %vm855, %v1013, 0.0
    %v1101 = vadd.f32 %v1099, %v1100
    %v1102 = vsel %vm855, %v1014, 0.0
    %v1103 = vadd.f32 %v1101, %v1102
    %v1104 = vsel %vm855, %v1015, 0.0
    %v1105 = vadd.f32 %v1103, %v1104
    %v1106 = vsel %vm855, %v1016, 0.0
    %v1107 = vadd.f32 %v1105, %v1106
    %v1108 = vsel %vm855, %v1017, 0.0
    %v1109 = vadd.f32 %v1107, %v1108
    %v1110 = vsel %vm855, %v1018, 0.0
    %v1111 = vadd.f32 %v1109, %v1110
    %v1112 = vsel %vm855, %v1019, 0.0
    %v1113 = vadd.f32 %v1111, %v1112
    %v1114 = vsel %vm855, %v1020, 0.0
    %v1115 = vadd.f32 %v1113, %v1114
    %v1116 = vsel %vm855, %v1021, 0.0
    %v1117 = vadd.f32 %v1115, %v1116
    %v1118 = vsel %vm855, %v1022, 0.0
    %v1119 = vadd.f32 %v1117, %v1118
    %v1120 = vsel %vm855, %v1023, 0.0
    %v1121 = vadd.f32 %v1119, %v1120
    %v1122 = vsel %vm855, %v1024, 0.0
    %v1123 = vadd.f32 %v1121, %v1122
    %v1124 = vsel %vm855, %v1025, 0.0
    %v1125 = vadd.f32 %v1123, %v1124
    %v1126 = vsel %vm855, %v1026, 0.0
    %v1127 = vadd.f32 %v1125, %v1126
    %v1128 = vsel %vm855, %v1027, 0.0
    %v1129 = vadd.f32 %v1127, %v1128
    %v1130 = vsel %vm855, %v1028, 0.0
    %v1131 = vadd.f32 %v1129, %v1130
    %v1132 = vsel %vm855, %v1029, 0.0
    %v1133 = vadd.f32 %v1131, %v1132
    %v1134 = vsel %vm855, %v1030, 0.0
    %v1135 = vadd.f32 %v1133, %v1134
    %v1136 = vsel %vm855, %v1031, 0.0
    %v1137 = vadd.f32 %v1135, %v1136
    %v1138 = vsel %vm855, %v1032, 0.0
    %v1139 = vadd.f32 %v1137, %v1138
    %v1140 = vsel %vm855, %v1033, 0.0
    %v1141 = vadd.f32 %v1139, %v1140
    %v1142 = vsel %vm855, %v1034, 0.0
    %v1143 = vadd.f32 %v1141, %v1142
    %v1144 = vsel %vm855, %v1035, 0.0
    %v1145 = vadd.f32 %v1143, %v1144
    %v1146 = vsel %vm855, %v1036, 0.0
    %v1147 = vadd.f32 %v1145, %v1146
    %v1148 = vsel %vm855, %v1037, 0.0
    %v1149 = vadd.f32 %v1147, %v1148
    %v1150 = vsel %vm855, %v1038, 0.0
    %v1151 = vadd.f32 %v1149, %v1150
    %v1152 = vsel %vm855, %v1039, 0.0
    %v1153 = vadd.f32 %v1151, %v1152
    %v1154 = vsel %vm855, %v1040, 0.0
    %v1155 = vadd.f32 %v1153, %v1154
    %v1156 = vsel %vm855, %v1041, 0.0
    %v1157 = vadd.f32 %v1155, %v1156
    %v1158 = vsel %vm855, %v1042, 0.0
    %v1159 = vadd.f32 %v1157, %v1158
    %v1160 = vsel %vm855, %v1043, 0.0
    %v1161 = vadd.f32 %v1159, %v1160
    %v1162 = vsel %vm855, %v1044, 0.0
    %v1163 = vadd.f32 %v1161, %v1162
    %v1164 = vsel %vm855, %v1045, 0.0
    %v1165 = vadd.f32 %v1163, %v1164
    %v1166 = vsel %vm855, %v1046, 0.0
    %v1167 = vadd.f32 %v1165, %v1166
    %v1168 = vsel %vm855, %v1047, 0.0
    %v1169 = vadd.f32 %v1167, %v1168
    %v1170 = vsel %vm855, %v1048, 0.0
    %v1171 = vadd.f32 %v1169, %v1170
    %v1172 = vsel %vm855, %v1049, 0.0
    %v1173 = vadd.f32 %v1171, %v1172
    %v1174 = vsel %vm855, %v1050, 0.0
    %v1175 = vadd.f32 %v1173, %v1174
    %v1176 = vsel %vm855, %v1051, 0.0
    %v1177 = vadd.f32 %v1175, %v1176
    %v1178 = vsel %vm855, %v1052, 0.0
    %v1179 = vadd.f32 %v1177, %v1178
    %v1180 = vrot.slane %v1179, 4
    %v1181 = vadd.f32 %v1179, %v1180
    %v1182 = vrot.slane %v1181, 2
    %v1183 = vadd.f32 %v1181, %v1182
    %v1184 = vrot.slane %v1183, 1
    %v1185 = vadd.f32 %v1183, %v1184
    %vm1186 = vcmask 1040384
    %v1187 = vsel %vm1186, %v988, %v1185
    %vm1188 = vcmask 25600
    %1189 = vst.msk [vmem:[#allocation8] sm:$0x3] %vm1188, %v1187
    // Predicated region
    $region18: #{tpu_custom_call.1} parent=1 // pred_check
      _
    $region19: #{tpu_custom_call.1} parent=1 // pred_check_branch
      %1191 = sbr.rel (0) target = $region21
    $region20: #{tpu_custom_call.1} parent=1 // pred_region
      %s1193 = ssub.s32 4096, 4096
      %1194 = vsyncadd [#allocation4], %s1193
      %s1195 = sshll.u32 [#allocation7], 4
      %s1196 = int_to_ptr.vmem [resolvable:$true] %s1195
      %1201 = dma.vmem_to_hbm [thread:$0]  %s1196, 4096, %s2, [#allocation4], 64, 64, 4
    $region21: #{tpu_custom_call.1} parent=1 // pred_fallthru
      _
    // Predicated region
    $region22: #{tpu_custom_call.1} parent=1 // pred_check
      _
    $region23: #{tpu_custom_call.1} parent=1 // pred_check_branch
      %1203 = sbr.rel (0) target = $region25
    $region24: #{tpu_custom_call.1} parent=1 // pred_region
      %s1205 = ssub.s32 32, 32
      %1206 = vsyncadd [#allocation9], %s1205
      %s1208 = sshll.u32 [#allocation8], 4
      %s1209 = int_to_ptr.vmem [resolvable:$true] %s1208
      %1211 = dma.vmem_to_hbm [thread:$0]  %s1209, 32, %s3, [#allocation9]
    $region25: #{tpu_custom_call.1} parent=1 // pred_fallthru
      _
    // Predicated region
    $region26: #{tpu_custom_call.1} parent=1 // pred_check
      _
    $region27: #{tpu_custom_call.1} parent=1 // pred_check_branch
      %1213 = sbr.rel (0) target = $region29
    $region28: #{tpu_custom_call.1} parent=1 // pred_region
      %1214 = dma.done [#allocation4], 4096
    $region29: #{tpu_custom_call.1} parent=1 // pred_fallthru
      _
    // Predicated region
    $region30: #{tpu_custom_call.1} parent=1 // pred_check
      _
    $region31: #{tpu_custom_call.1} parent=1 // pred_check_branch
      %1216 = sbr.rel (0) target = $region33
    $region32: #{tpu_custom_call.1} parent=1 // pred_region
      %1217 = dma.done [#allocation9], 32
    $region33: #{tpu_custom_call.1} parent=1 // pred_fallthru
      _
    %1218 = vsyncpa [#allocation3], 1
    %1219 = vsyncpa [#allocation6], 1
    %1220 = vsyncpa [#allocation4], 1
    %1221 = vsyncpa [#allocation9], 1

</llo_original>
